<compile_context>
chip_gen: v7x
topology: tpu7x:2x2x1
jax: 0.10.0
libtpu: 0.0.40
codegen_flags: <defaults>
</compile_context>

<pallas_src>
import functools
import math

import jax
import jax.numpy as jnp
from jax.experimental import pallas as pl
from jax.experimental.pallas import tpu as pltpu  # noqa: F401


# ----------------------------- in-kernel math helpers -------------------------


def _layer_norm(v, g, b, eps=1e-5):
    # v: (R, E); g, b: (1, E) -- all f32
    mu = jnp.mean(v, axis=-1, keepdims=True)
    var = jnp.mean((v - mu) ** 2, axis=-1, keepdims=True)
    return (v - mu) * jax.lax.rsqrt(var + eps) * g + b


def _erf(v):
    # Abramowitz & Stegun 7.1.26 (max abs error ~1.5e-7); exp/mul/div only.
    a1, a2, a3, a4, a5 = 0.254829592, -0.284496736, 1.421413741, -1.453152027, 1.061405429
    pp = 0.3275911
    av = jnp.abs(v)
    t = 1.0 / (1.0 + pp * av)
    poly = ((((a5 * t + a4) * t + a3) * t + a2) * t + a1) * t
    y = 1.0 - poly * jnp.exp(-av * av)
    return jnp.where(v < 0.0, -y, y)


def _gelu_exact(v):
    # PyTorch nn.GELU() default: exact erf formulation.
    return 0.5 * v * (1.0 + _erf(v * (1.0 / math.sqrt(2.0))))


# ----------------------------- kernel ---------------------------------------


def transformer_block_kernel(
    x_ref,       # (R, E)    f32   R = B*S, rows ordered (s, b) row-major
    ln1_g_ref,   # (1, E)    f32
    ln1_b_ref,   # (1, E)    f32
    wqkv_ref,    # (E, 3E)   bf16  [Wq*scale | Wk | Wv]
    bqkv_ref,    # (1, 3E)   f32   [bq*scale | bk | bv]
    bias_ref,    # (R, R)    f32   0 within a batch element, -1e30 across batches
    wo_ref,      # (E, E)    bf16  out_proj.weight.T
    bo_ref,      # (1, E)    f32
    ln2_g_ref,   # (1, E)    f32
    ln2_b_ref,   # (1, E)    f32
    w1_ref,      # (E, 4E)   bf16
    b1_ref,      # (1, 4E)   f32
    w2_ref,      # (4E, E)   bf16
    b2_ref,      # (1, E)    f32
    o_ref,       # (R, E)    f32
    *,
    n_head: int,
):
    f32 = jnp.float32
    bf16 = jnp.bfloat16

    x = x_ref[...]                          # (R, E) f32 ; residual path stays f32
    R, E = x.shape
    H = n_head
    hd = E // H

    # ---- LayerNorm 1 (f32) ----
    x_ln1 = _layer_norm(x, ln1_g_ref[...], ln1_b_ref[...])

    # ---- fused QKV projection: one M=R, K=E, N=3E MXU issue ----
    qkv = jnp.dot(x_ln1.astype(bf16), wqkv_ref[...],
                  preferred_element_type=f32) + bqkv_ref[...]        # (R, 3E); q pre-scaled

    # ---- split heads (static lane slices stacked on a leading batch axis) ----
    def split_heads(base):
        return jnp.stack(
            [qkv[:, base + h * hd: base + (h + 1) * hd] for h in range(H)], axis=0)

    q = split_heads(0).astype(bf16)         # (H, R, hd)
    k = split_heads(E).astype(bf16)
    v = split_heads(2 * E).astype(bf16)

    # ---- scores over all R rows at once; cross-batch pairs killed by additive bias ----
    s = jnp.einsum("hqd,hkd->hqk", q, k, preferred_element_type=f32)  # (H, R, R)
    s = s + bias_ref[...]

    # ---- softmax (f32; EUP reciprocal, ~1e-3 approx) ----
    m = jnp.max(s, axis=-1, keepdims=True)
    p = jnp.exp(s - m)
    denom = jnp.sum(p, axis=-1, keepdims=True)
    p = p * pl.reciprocal(denom, approx=True)

    # ---- attention context ----
    ctx = jnp.einsum("hqk,hkd->hqd", p.astype(bf16), v,
                     preferred_element_type=f32)                      # (H, R, hd)

    # ---- head concat (lane axis) folded into ONE K=E output projection ----
    ctx_flat = jnp.concatenate([ctx[h] for h in range(H)], axis=-1)   # (R, E), head-major
    attn = jnp.dot(ctx_flat.astype(bf16), wo_ref[...],
                   preferred_element_type=f32) + bo_ref[...]          # (R, E)

    # ---- residual 1 ----
    x1 = x + attn

    # ---- LayerNorm 2 + MLP ----
    x_ln2 = _layer_norm(x1, ln2_g_ref[...], ln2_b_ref[...])
    h1 = jnp.dot(x_ln2.astype(bf16), w1_ref[...],
                 preferred_element_type=f32) + b1_ref[...]            # (R, 4E)
    h1 = _gelu_exact(h1)
    mlp = jnp.dot(h1.astype(bf16), w2_ref[...],
                  preferred_element_type=f32) + b2_ref[...]           # (R, E)
    # TODO(synk): dropout is identity (inference mode); no RNG-based dropout in kernel.

    # ---- residual 2 ----
    o_ref[...] = (x1 + mlp).astype(o_ref.dtype)


# ----------------------------- wrapper ---------------------------------------


def transformer_block_pallas(x_sbe, params, n_head):
    """x_sbe: (S, B, E) float32 — nn.MultiheadAttention (batch_first=False) layout."""
    S, B, E = x_sbe.shape
    H = n_head
    hd = E // H
    R = S * B
    scale = 1.0 / math.sqrt(hd)

    # Fused QKV weight/bias; 1/sqrt(hd) folded into the Q columns (exact).
    col_scale = jnp.concatenate(
        [jnp.full((E,), scale, jnp.float32), jnp.ones((2 * E,), jnp.float32)])
    wqkv_t = (params["wqkv"].T * col_scale[None, :]).astype(jnp.bfloat16)   # (E, 3E)
    bqkv = (params["bqkv"] * col_scale).reshape(1, 3 * E).astype(jnp.float32)

    wo_t = params["wo"].T.astype(jnp.bfloat16)             # (E, E)
    bo = params["bo"].reshape(1, E).astype(jnp.float32)
    w1_t = params["w1"].T.astype(jnp.bfloat16)             # (E, 4E)
    b1 = params["b1"].reshape(1, 4 * E).astype(jnp.float32)
    w2_t = params["w2"].T.astype(jnp.bfloat16)             # (4E, E)
    b2 = params["b2"].reshape(1, E).astype(jnp.float32)

    ln1_g = params["ln1_g"].reshape(1, E).astype(jnp.float32)
    ln1_b = params["ln1_b"].reshape(1, E).astype(jnp.float32)
    ln2_g = params["ln2_g"].reshape(1, E).astype(jnp.float32)
    ln2_b = params["ln2_b"].reshape(1, E).astype(jnp.float32)

    # Additive block-diagonal bias keeping attention within each batch element.
    # Flattened rows are ordered (s, b) row-major -> batch id of row i is i % B.
    rb = jnp.arange(R, dtype=jnp.int32) % B
    attn_bias = jnp.where(rb[:, None] == rb[None, :], 0.0, -1e30).astype(jnp.float32)

    # (S, B, E) -> (S*B, E): free row-major reshape in HBM (no transpose / relayout).
    x_flat = x_sbe.reshape(R, E)

    out_flat = pl.pallas_call(
        functools.partial(transformer_block_kernel, n_head=H),
        out_shape=jax.ShapeDtypeStruct((R, E), jnp.float32),
        # No grid: the whole (tiny) problem is one block; every operand is a full-array
        # VMEM block (default BlockSpecs), so there is exactly one pipeline step and no
        # cross-TensorCore sharding overhead.
    )(x_flat, ln1_g, ln1_b, wqkv_t, bqkv, attn_bias, wo_t, bo,
      ln2_g, ln2_b, w1_t, b1, w2_t, b2)

    return out_flat.reshape(S, B, E)


# ----------------------------- reference (plain JAX, f32) ---------------------


def transformer_block_ref(x_sbe, params, n_head):
    def ln(v, g, b, eps=1e-5):
        mu = jnp.mean(v, axis=-1, keepdims=True)
        var = jnp.mean((v - mu) ** 2, axis=-1, keepdims=True)
        return (v - mu) / jnp.sqrt(var + eps) * g + b

    S, B, E = x_sbe.shape
    H = n_head
    hd = E // H
    x = jnp.transpose(x_sbe, (1, 0, 2))            # (B, S, E)

    x_ln1 = ln(x, params["ln1_g"], params["ln1_b"])
    qkv = x_ln1 @ params["wqkv"].T + params["bqkv"]
    q, k, v = jnp.split(qkv, 3, axis=-1)

    def split_heads(t):                            # (B, S, E) -> (B, H, S, hd)
        return t.reshape(B, S, H, hd).transpose(0, 2, 1, 3)

    qh, kh, vh = split_heads(q), split_heads(k), split_heads(v)
    s = jnp.einsum("bhqd,bhkd->bhqk", qh, kh) / math.sqrt(hd)
    p = jax.nn.softmax(s, axis=-1)
    a = jnp.einsum("bhqk,bhkd->bhqd", p, vh).transpose(0, 2, 1, 3).reshape(B, S, E)
    attn = a @ params["wo"].T + params["bo"]

    x1 = x + attn
    x_ln2 = ln(x1, params["ln2_g"], params["ln2_b"])
    h1 = x_ln2 @ params["w1"].T + params["b1"]
    h1 = 0.5 * h1 * (1.0 + jax.scipy.special.erf(h1 / math.sqrt(2.0)))
    mlp = h1 @ params["w2"].T + params["b2"]
    return jnp.transpose(x1 + mlp, (1, 0, 2))      # (S, B, E)


# ----------------------------- main -------------------------------------------


if __name__ == "__main__":
    # config: n_embd=32, n_head=4, dropout=0.0, bias=True; seq=8, batch=2
    S, B, E, H = 8, 2, 32, 4
    ks = jax.random.split(jax.random.PRNGKey(0), 12)

    std = 0.02
    params = {
        "ln1_g": 1.0 + 0.1 * jax.random.normal(ks[0], (E,), jnp.float32),
        "ln1_b": 0.1 * jax.random.normal(ks[1], (E,), jnp.float32),
        "wqkv": std * jax.random.normal(ks[2], (3 * E, E), jnp.float32),   # in_proj_weight
        "bqkv": std * jax.random.normal(ks[3], (3 * E,), jnp.float32),     # in_proj_bias
        "wo":   std * jax.random.normal(ks[4], (E, E), jnp.float32),       # out_proj.weight
        "bo":   std * jax.random.normal(ks[5], (E,), jnp.float32),
        "ln2_g": 1.0 + 0.1 * jax.random.normal(ks[6], (E,), jnp.float32),
        "ln2_b": 0.1 * jax.random.normal(ks[7], (E,), jnp.float32),
        "w1":   std * jax.random.normal(ks[8], (4 * E, E), jnp.float32),   # mlp fc1
        "b1":   std * jax.random.normal(ks[9], (4 * E,), jnp.float32),
        "w2":   std * jax.random.normal(ks[10], (E, 4 * E), jnp.float32),  # mlp fc2
        "b2":   jnp.zeros((E,), jnp.float32),
    }

    x = jax.random.normal(ks[11], (S, B, E), jnp.float32)   # (seq, batch, embd)

    out = jax.block_until_ready(transformer_block_pallas(x, params, H))
    ref = transformer_block_ref(x, params, H)

    assert out.shape == (S, B, E)
    assert bool(jnp.all(jnp.isfinite(out)))
    assert bool(jnp.allclose(out, ref, rtol=1e-2, atol=1e-2)), "mismatch vs reference"

    print("KERNEL_OK")
</pallas_src>

<mosaic_0001>
module attributes {stable_mosaic.version = 11 : i64} {
  func.func @transformer_block_kernel(%arg0: memref<16x32xf32, #tpu.memory_space<vmem>>, %arg1: memref<1x32xf32, #tpu.memory_space<vmem>>, %arg2: memref<1x32xf32, #tpu.memory_space<vmem>>, %arg3: memref<32x96xbf16, #tpu.memory_space<vmem>>, %arg4: memref<1x96xf32, #tpu.memory_space<vmem>>, %arg5: memref<16x16xf32, #tpu.memory_space<vmem>>, %arg6: memref<32x32xbf16, #tpu.memory_space<vmem>>, %arg7: memref<1x32xf32, #tpu.memory_space<vmem>>, %arg8: memref<1x32xf32, #tpu.memory_space<vmem>>, %arg9: memref<1x32xf32, #tpu.memory_space<vmem>>, %arg10: memref<32x128xbf16, #tpu.memory_space<vmem>>, %arg11: memref<1x128xf32, #tpu.memory_space<vmem>>, %arg12: memref<128x32xbf16, #tpu.memory_space<vmem>>, %arg13: memref<1x32xf32, #tpu.memory_space<vmem>>, %arg14: memref<16x32xf32, #tpu.memory_space<vmem>>) attributes {dimension_semantics = [], scalar_prefetch = 0 : i64, scratch_operands = 0 : i64, tpu.core_type = #tpu.core_type<tc>} {
    %c0 = arith.constant 0 : index
    %c0_0 = arith.constant 0 : index
    %0 = vector.load %arg0[%c0, %c0_0] : memref<16x32xf32, #tpu.memory_space<vmem>>, vector<16x32xf32>
    %c0_1 = arith.constant 0 : index
    %c0_2 = arith.constant 0 : index
    %1 = vector.load %arg1[%c0_1, %c0_2] : memref<1x32xf32, #tpu.memory_space<vmem>>, vector<1x32xf32>
    %c0_3 = arith.constant 0 : index
    %c0_4 = arith.constant 0 : index
    %2 = vector.load %arg2[%c0_3, %c0_4] : memref<1x32xf32, #tpu.memory_space<vmem>>, vector<1x32xf32>
    %cst = arith.constant dense<0.000000e+00> : vector<16xf32>
    %3 = vector.multi_reduction <add>, %0, %cst [1] : vector<16x32xf32> to vector<16xf32>
    %4 = vector.shape_cast %3 : vector<16xf32> to vector<16x1xf32>
    %cst_5 = arith.constant 3.200000e+01 : f32
    %5 = vector.broadcast %cst_5 : f32 to vector<16x1xf32>
    %6 = arith.divf %4, %5 : vector<16x1xf32>
    %7 = vector.broadcast %6 : vector<16x1xf32> to vector<16x32xf32>
    %8 = arith.subf %0, %7 : vector<16x32xf32>
    %9 = arith.mulf %8, %8 : vector<16x32xf32>
    %cst_6 = arith.constant dense<0.000000e+00> : vector<16xf32>
    %10 = vector.multi_reduction <add>, %9, %cst_6 [1] : vector<16x32xf32> to vector<16xf32>
    %11 = vector.shape_cast %10 : vector<16xf32> to vector<16x1xf32>
    %cst_7 = arith.constant 3.200000e+01 : f32
    %12 = vector.broadcast %cst_7 : f32 to vector<16x1xf32>
    %13 = arith.divf %11, %12 : vector<16x1xf32>
    %14 = vector.broadcast %6 : vector<16x1xf32> to vector<16x32xf32>
    %15 = arith.subf %0, %14 : vector<16x32xf32>
    %cst_8 = arith.constant 9.99999974E-6 : f32
    %16 = vector.broadcast %cst_8 : f32 to vector<16x1xf32>
    %17 = arith.addf %13, %16 : vector<16x1xf32>
    %18 = math.rsqrt %17 : vector<16x1xf32>
    %19 = vector.broadcast %18 : vector<16x1xf32> to vector<16x32xf32>
    %20 = arith.mulf %15, %19 : vector<16x32xf32>
    %21 = vector.broadcast %1 : vector<1x32xf32> to vector<16x32xf32>
    %22 = arith.mulf %20, %21 : vector<16x32xf32>
    %23 = vector.broadcast %2 : vector<1x32xf32> to vector<16x32xf32>
    %24 = arith.addf %22, %23 : vector<16x32xf32>
    %25 = arith.truncf %24 : vector<16x32xf32> to vector<16x32xbf16>
    %c0_9 = arith.constant 0 : index
    %c0_10 = arith.constant 0 : index
    %26 = vector.load %arg3[%c0_9, %c0_10] : memref<32x96xbf16, #tpu.memory_space<vmem>>, vector<32x96xbf16>
    %cst_11 = arith.constant dense<0.000000e+00> : vector<16x96xf32>
    %27 = tpu.matmul %25, %26, %cst_11 {dimension_numbers = #tpu.dot_dimension_numbers<[1], [0], [0], [1], [0, 0, 1, 1], [], []>} : vector<16x32xbf16>, vector<32x96xbf16>, vector<16x96xf32> -> vector<16x96xf32>
    %c0_12 = arith.constant 0 : index
    %c0_13 = arith.constant 0 : index
    %28 = vector.load %arg4[%c0_12, %c0_13] : memref<1x96xf32, #tpu.memory_space<vmem>>, vector<1x96xf32>
    %29 = vector.broadcast %28 : vector<1x96xf32> to vector<16x96xf32>
    %30 = arith.addf %27, %29 : vector<16x96xf32>
    %31 = vector.extract_strided_slice %30 {offsets = [0, 0], sizes = [16, 8], strides = [1, 1]} : vector<16x96xf32> to vector<16x8xf32>
    %32 = vector.extract_strided_slice %30 {offsets = [0, 8], sizes = [16, 8], strides = [1, 1]} : vector<16x96xf32> to vector<16x8xf32>
    %33 = vector.extract_strided_slice %30 {offsets = [0, 16], sizes = [16, 8], strides = [1, 1]} : vector<16x96xf32> to vector<16x8xf32>
    %34 = vector.extract_strided_slice %30 {offsets = [0, 24], sizes = [16, 8], strides = [1, 1]} : vector<16x96xf32> to vector<16x8xf32>
    %35 = vector.shape_cast %31 : vector<16x8xf32> to vector<1x16x8xf32>
    %36 = vector.shape_cast %32 : vector<16x8xf32> to vector<1x16x8xf32>
    %37 = vector.shape_cast %33 : vector<16x8xf32> to vector<1x16x8xf32>
    %38 = vector.shape_cast %34 : vector<16x8xf32> to vector<1x16x8xf32>
    %39 = tpu.concatenate %35, %36, %37, %38 in 0 : vector<1x16x8xf32>, vector<1x16x8xf32>, vector<1x16x8xf32>, vector<1x16x8xf32> -> vector<4x16x8xf32>
    %40 = arith.truncf %39 : vector<4x16x8xf32> to vector<4x16x8xbf16>
    %41 = vector.extract_strided_slice %30 {offsets = [0, 32], sizes = [16, 8], strides = [1, 1]} : vector<16x96xf32> to vector<16x8xf32>
    %42 = vector.extract_strided_slice %30 {offsets = [0, 40], sizes = [16, 8], strides = [1, 1]} : vector<16x96xf32> to vector<16x8xf32>
    %43 = vector.extract_strided_slice %30 {offsets = [0, 48], sizes = [16, 8], strides = [1, 1]} : vector<16x96xf32> to vector<16x8xf32>
    %44 = vector.extract_strided_slice %30 {offsets = [0, 56], sizes = [16, 8], strides = [1, 1]} : vector<16x96xf32> to vector<16x8xf32>
    %45 = vector.shape_cast %41 : vector<16x8xf32> to vector<1x16x8xf32>
    %46 = vector.shape_cast %42 : vector<16x8xf32> to vector<1x16x8xf32>
    %47 = vector.shape_cast %43 : vector<16x8xf32> to vector<1x16x8xf32>
    %48 = vector.shape_cast %44 : vector<16x8xf32> to vector<1x16x8xf32>
    %49 = tpu.concatenate %45, %46, %47, %48 in 0 : vector<1x16x8xf32>, vector<1x16x8xf32>, vector<1x16x8xf32>, vector<1x16x8xf32> -> vector<4x16x8xf32>
    %50 = arith.truncf %49 : vector<4x16x8xf32> to vector<4x16x8xbf16>
    %51 = vector.extract_strided_slice %30 {offsets = [0, 64], sizes = [16, 8], strides = [1, 1]} : vector<16x96xf32> to vector<16x8xf32>
    %52 = vector.extract_strided_slice %30 {offsets = [0, 72], sizes = [16, 8], strides = [1, 1]} : vector<16x96xf32> to vector<16x8xf32>
    %53 = vector.extract_strided_slice %30 {offsets = [0, 80], sizes = [16, 8], strides = [1, 1]} : vector<16x96xf32> to vector<16x8xf32>
    %54 = vector.extract_strided_slice %30 {offsets = [0, 88], sizes = [16, 8], strides = [1, 1]} : vector<16x96xf32> to vector<16x8xf32>
    %55 = vector.shape_cast %51 : vector<16x8xf32> to vector<1x16x8xf32>
    %56 = vector.shape_cast %52 : vector<16x8xf32> to vector<1x16x8xf32>
    %57 = vector.shape_cast %53 : vector<16x8xf32> to vector<1x16x8xf32>
    %58 = vector.shape_cast %54 : vector<16x8xf32> to vector<1x16x8xf32>
    %59 = tpu.concatenate %55, %56, %57, %58 in 0 : vector<1x16x8xf32>, vector<1x16x8xf32>, vector<1x16x8xf32>, vector<1x16x8xf32> -> vector<4x16x8xf32>
    %60 = arith.truncf %59 : vector<4x16x8xf32> to vector<4x16x8xbf16>
    "tpu.trace_start"() <{level = 10 : i32, message = "hqd,hkd->hqk"}> : () -> ()
    %cst_14 = arith.constant dense<0.000000e+00> : vector<4x16x16xf32>
    %61 = tpu.matmul %40, %50, %cst_14 {dimension_numbers = #tpu.dot_dimension_numbers<[2], [2], [1], [1], [0, 0, 0, 1, 1, 1], [0], [0]>} : vector<4x16x8xbf16>, vector<4x16x8xbf16>, vector<4x16x16xf32> -> vector<4x16x16xf32>
    "tpu.trace_stop"() : () -> ()
    %c0_15 = arith.constant 0 : index
    %c0_16 = arith.constant 0 : index
    %62 = vector.load %arg5[%c0_15, %c0_16] : memref<16x16xf32, #tpu.memory_space<vmem>>, vector<16x16xf32>
    %63 = vector.shape_cast %62 : vector<16x16xf32> to vector<1x16x16xf32>
    %64 = vector.broadcast %63 : vector<1x16x16xf32> to vector<4x16x16xf32>
    %65 = arith.addf %61, %64 : vector<4x16x16xf32>
    %cst_17 = arith.constant dense<0xFF800000> : vector<4x16xf32>
    %66 = vector.multi_reduction <maximumf>, %65, %cst_17 [2] : vector<4x16x16xf32> to vector<4x16xf32>
    %67 = vector.shape_cast %66 : vector<4x16xf32> to vector<4x16x1xf32>
    %68 = vector.broadcast %67 : vector<4x16x1xf32> to vector<4x16x16xf32>
    %69 = arith.subf %65, %68 : vector<4x16x16xf32>
    %70 = math.exp %69 : vector<4x16x16xf32>
    %cst_18 = arith.constant dense<0.000000e+00> : vector<4x16xf32>
    %71 = vector.multi_reduction <add>, %70, %cst_18 [2] : vector<4x16x16xf32> to vector<4x16xf32>
    %72 = vector.shape_cast %71 : vector<4x16xf32> to vector<4x16x1xf32>
    %73 = tpu.reciprocal %72 {approx = true} : vector<4x16x1xf32> -> vector<4x16x1xf32>
    %74 = vector.broadcast %73 : vector<4x16x1xf32> to vector<4x16x16xf32>
    %75 = arith.mulf %70, %74 : vector<4x16x16xf32>
    %76 = arith.truncf %75 : vector<4x16x16xf32> to vector<4x16x16xbf16>
    "tpu.trace_start"() <{level = 10 : i32, message = "hqk,hkd->hqd"}> : () -> ()
    %cst_19 = arith.constant dense<0.000000e+00> : vector<4x16x8xf32>
    %77 = tpu.matmul %76, %60, %cst_19 {dimension_numbers = #tpu.dot_dimension_numbers<[2], [1], [1], [2], [0, 0, 0, 1, 1, 2], [0], [0]>} : vector<4x16x16xbf16>, vector<4x16x8xbf16>, vector<4x16x8xf32> -> vector<4x16x8xf32>
    "tpu.trace_stop"() : () -> ()
    %78 = vector.extract_strided_slice %77 {offsets = [0, 0, 0], sizes = [1, 16, 8], strides = [1, 1, 1]} : vector<4x16x8xf32> to vector<1x16x8xf32>
    %79 = vector.shape_cast %78 : vector<1x16x8xf32> to vector<16x8xf32>
    %80 = vector.extract_strided_slice %77 {offsets = [1, 0, 0], sizes = [1, 16, 8], strides = [1, 1, 1]} : vector<4x16x8xf32> to vector<1x16x8xf32>
    %81 = vector.shape_cast %80 : vector<1x16x8xf32> to vector<16x8xf32>
    %82 = vector.extract_strided_slice %77 {offsets = [2, 0, 0], sizes = [1, 16, 8], strides = [1, 1, 1]} : vector<4x16x8xf32> to vector<1x16x8xf32>
    %83 = vector.shape_cast %82 : vector<1x16x8xf32> to vector<16x8xf32>
    %84 = vector.extract_strided_slice %77 {offsets = [3, 0, 0], sizes = [1, 16, 8], strides = [1, 1, 1]} : vector<4x16x8xf32> to vector<1x16x8xf32>
    %85 = vector.shape_cast %84 : vector<1x16x8xf32> to vector<16x8xf32>
    %86 = tpu.concatenate %79, %81, %83, %85 in 1 : vector<16x8xf32>, vector<16x8xf32>, vector<16x8xf32>, vector<16x8xf32> -> vector<16x32xf32>
    %87 = arith.truncf %86 : vector<16x32xf32> to vector<16x32xbf16>
    %c0_20 = arith.constant 0 : index
    %c0_21 = arith.constant 0 : index
    %88 = vector.load %arg6[%c0_20, %c0_21] : memref<32x32xbf16, #tpu.memory_space<vmem>>, vector<32x32xbf16>
    %cst_22 = arith.constant dense<0.000000e+00> : vector<16x32xf32>
    %89 = tpu.matmul %87, %88, %cst_22 {dimension_numbers = #tpu.dot_dimension_numbers<[1], [0], [0], [1], [0, 0, 1, 1], [], []>} : vector<16x32xbf16>, vector<32x32xbf16>, vector<16x32xf32> -> vector<16x32xf32>
    %c0_23 = arith.constant 0 : index
    %c0_24 = arith.constant 0 : index
    %90 = vector.load %arg7[%c0_23, %c0_24] : memref<1x32xf32, #tpu.memory_space<vmem>>, vector<1x32xf32>
    %91 = vector.broadcast %90 : vector<1x32xf32> to vector<16x32xf32>
    %92 = arith.addf %89, %91 : vector<16x32xf32>
    %93 = arith.addf %0, %92 : vector<16x32xf32>
    %c0_25 = arith.constant 0 : index
    %c0_26 = arith.constant 0 : index
    %94 = vector.load %arg8[%c0_25, %c0_26] : memref<1x32xf32, #tpu.memory_space<vmem>>, vector<1x32xf32>
    %c0_27 = arith.constant 0 : index
    %c0_28 = arith.constant 0 : index
    %95 = vector.load %arg9[%c0_27, %c0_28] : memref<1x32xf32, #tpu.memory_space<vmem>>, vector<1x32xf32>
    %cst_29 = arith.constant dense<0.000000e+00> : vector<16xf32>
    %96 = vector.multi_reduction <add>, %93, %cst_29 [1] : vector<16x32xf32> to vector<16xf32>
    %97 = vector.shape_cast %96 : vector<16xf32> to vector<16x1xf32>
    %cst_30 = arith.constant 3.200000e+01 : f32
    %98 = vector.broadcast %cst_30 : f32 to vector<16x1xf32>
    %99 = arith.divf %97, %98 : vector<16x1xf32>
    %100 = vector.broadcast %99 : vector<16x1xf32> to vector<16x32xf32>
    %101 = arith.subf %93, %100 : vector<16x32xf32>
    %102 = arith.mulf %101, %101 : vector<16x32xf32>
    %cst_31 = arith.constant dense<0.000000e+00> : vector<16xf32>
    %103 = vector.multi_reduction <add>, %102, %cst_31 [1] : vector<16x32xf32> to vector<16xf32>
    %104 = vector.shape_cast %103 : vector<16xf32> to vector<16x1xf32>
    %cst_32 = arith.constant 3.200000e+01 : f32
    %105 = vector.broadcast %cst_32 : f32 to vector<16x1xf32>
    %106 = arith.divf %104, %105 : vector<16x1xf32>
    %107 = vector.broadcast %99 : vector<16x1xf32> to vector<16x32xf32>
    %108 = arith.subf %93, %107 : vector<16x32xf32>
    %cst_33 = arith.constant 9.99999974E-6 : f32
    %109 = vector.broadcast %cst_33 : f32 to vector<16x1xf32>
    %110 = arith.addf %106, %109 : vector<16x1xf32>
    %111 = math.rsqrt %110 : vector<16x1xf32>
    %112 = vector.broadcast %111 : vector<16x1xf32> to vector<16x32xf32>
    %113 = arith.mulf %108, %112 : vector<16x32xf32>
    %114 = vector.broadcast %94 : vector<1x32xf32> to vector<16x32xf32>
    %115 = arith.mulf %113, %114 : vector<16x32xf32>
    %116 = vector.broadcast %95 : vector<1x32xf32> to vector<16x32xf32>
    %117 = arith.addf %115, %116 : vector<16x32xf32>
    %118 = arith.truncf %117 : vector<16x32xf32> to vector<16x32xbf16>
    %c0_34 = arith.constant 0 : index
    %c0_35 = arith.constant 0 : index
    %119 = vector.load %arg10[%c0_34, %c0_35] : memref<32x128xbf16, #tpu.memory_space<vmem>>, vector<32x128xbf16>
    %cst_36 = arith.constant dense<0.000000e+00> : vector<16x128xf32>
    %120 = tpu.matmul %118, %119, %cst_36 {dimension_numbers = #tpu.dot_dimension_numbers<[1], [0], [0], [1], [0, 0, 1, 1], [], []>} : vector<16x32xbf16>, vector<32x128xbf16>, vector<16x128xf32> -> vector<16x128xf32>
    %c0_37 = arith.constant 0 : index
    %c0_38 = arith.constant 0 : index
    %121 = vector.load %arg11[%c0_37, %c0_38] : memref<1x128xf32, #tpu.memory_space<vmem>>, vector<1x128xf32>
    %122 = vector.broadcast %121 : vector<1x128xf32> to vector<16x128xf32>
    %123 = arith.addf %120, %122 : vector<16x128xf32>
    %cst_39 = arith.constant 5.000000e-01 : f32
    %124 = vector.broadcast %cst_39 : f32 to vector<16x128xf32>
    %125 = arith.mulf %124, %123 : vector<16x128xf32>
    %cst_40 = arith.constant 0.707106769 : f32
    %126 = vector.broadcast %cst_40 : f32 to vector<16x128xf32>
    %127 = arith.mulf %123, %126 : vector<16x128xf32>
    %128 = math.absf %127 : vector<16x128xf32>
    %cst_41 = arith.constant 0.327591091 : f32
    %129 = vector.broadcast %cst_41 : f32 to vector<16x128xf32>
    %130 = arith.mulf %129, %128 : vector<16x128xf32>
    %cst_42 = arith.constant 1.000000e+00 : f32
    %131 = vector.broadcast %cst_42 : f32 to vector<16x128xf32>
    %132 = arith.addf %131, %130 : vector<16x128xf32>
    %cst_43 = arith.constant 1.000000e+00 : f32
    %133 = vector.broadcast %cst_43 : f32 to vector<16x128xf32>
    %134 = arith.divf %133, %132 : vector<16x128xf32>
    %cst_44 = arith.constant 1.06140542 : f32
    %135 = vector.broadcast %cst_44 : f32 to vector<16x128xf32>
    %136 = arith.mulf %135, %134 : vector<16x128xf32>
    %cst_45 = arith.constant -1.45315206 : f32
    %137 = vector.broadcast %cst_45 : f32 to vector<16x128xf32>
    %138 = arith.addf %136, %137 : vector<16x128xf32>
    %139 = arith.mulf %138, %134 : vector<16x128xf32>
    %cst_46 = arith.constant 1.42141378 : f32
    %140 = vector.broadcast %cst_46 : f32 to vector<16x128xf32>
    %141 = arith.addf %139, %140 : vector<16x128xf32>
    %142 = arith.mulf %141, %134 : vector<16x128xf32>
    %cst_47 = arith.constant -0.284496725 : f32
    %143 = vector.broadcast %cst_47 : f32 to vector<16x128xf32>
    %144 = arith.addf %142, %143 : vector<16x128xf32>
    %145 = arith.mulf %144, %134 : vector<16x128xf32>
    %cst_48 = arith.constant 0.254829586 : f32
    %146 = vector.broadcast %cst_48 : f32 to vector<16x128xf32>
    %147 = arith.addf %145, %146 : vector<16x128xf32>
    %148 = arith.mulf %147, %134 : vector<16x128xf32>
    %cst_49 = arith.constant 0.000000e+00 : f32
    %149 = vector.broadcast %cst_49 : f32 to vector<16x128xf32>
    %150 = arith.subf %149, %128 : vector<16x128xf32>
    %151 = arith.mulf %150, %128 : vector<16x128xf32>
    %152 = math.exp %151 : vector<16x128xf32>
    %153 = arith.mulf %148, %152 : vector<16x128xf32>
    %cst_50 = arith.constant 1.000000e+00 : f32
    %154 = vector.broadcast %cst_50 : f32 to vector<16x128xf32>
    %155 = arith.subf %154, %153 : vector<16x128xf32>
    %cst_51 = arith.constant 0.000000e+00 : f32
    %156 = vector.broadcast %cst_51 : f32 to vector<16x128xf32>
    %157 = arith.cmpf olt, %127, %156 : vector<16x128xf32>
    %cst_52 = arith.constant 0.000000e+00 : f32
    %158 = vector.broadcast %cst_52 : f32 to vector<16x128xf32>
    %159 = arith.subf %158, %155 : vector<16x128xf32>
    %160 = arith.select %157, %159, %155 : vector<16x128xi1>, vector<16x128xf32>
    %cst_53 = arith.constant 1.000000e+00 : f32
    %161 = vector.broadcast %cst_53 : f32 to vector<16x128xf32>
    %162 = arith.addf %161, %160 : vector<16x128xf32>
    %163 = arith.mulf %125, %162 : vector<16x128xf32>
    %164 = arith.truncf %163 : vector<16x128xf32> to vector<16x128xbf16>
    %c0_54 = arith.constant 0 : index
    %c0_55 = arith.constant 0 : index
    %165 = vector.load %arg12[%c0_54, %c0_55] : memref<128x32xbf16, #tpu.memory_space<vmem>>, vector<128x32xbf16>
    %cst_56 = arith.constant dense<0.000000e+00> : vector<16x32xf32>
    %166 = tpu.matmul %164, %165, %cst_56 {dimension_numbers = #tpu.dot_dimension_numbers<[1], [0], [0], [1], [0, 0, 1, 1], [], []>} : vector<16x128xbf16>, vector<128x32xbf16>, vector<16x32xf32> -> vector<16x32xf32>
    %c0_57 = arith.constant 0 : index
    %c0_58 = arith.constant 0 : index
    %167 = vector.load %arg13[%c0_57, %c0_58] : memref<1x32xf32, #tpu.memory_space<vmem>>, vector<1x32xf32>
    %168 = vector.broadcast %167 : vector<1x32xf32> to vector<16x32xf32>
    %169 = arith.addf %166, %168 : vector<16x32xf32>
    %170 = arith.addf %93, %169 : vector<16x32xf32>
    %c0_59 = arith.constant 0 : index
    %c0_60 = arith.constant 0 : index
    %171 = vector.load %arg14[%c0_59, %c0_60] : memref<16x32xf32, #tpu.memory_space<vmem>>, vector<16x32xf32>
    tpu.vector_store %arg14[%c0_59, %c0_60], %170 {strides = array<i32>} : memref<16x32xf32, #tpu.memory_space<vmem>>, vector<16x32xf32>,
    return
  }
}

</mosaic_0001>

<llo_original>
// kernel: tpu_custom_call.1
$region0: #{tpu_custom_call.1}
  #allocation0 [shape = 'u32[]', space=smem, size = 0x4, offset = 0x4, fixed_abs, tag = 'smem constant byte address 0x4 - core index']
  #allocation1 [shape = 'u32[144,128]{1,0:T(1,128)}', space=vmem, size = 0x12000, scoped, tag = 'internal scratch']
  %s0 = inlined_call_operand.vmem [shape: f32[16,32], index: 0, kind: input, shape index: {}]
  %s1 = inlined_call_operand.vmem [shape: f32[1,32], index: 1, kind: input, shape index: {}]
  %s2 = inlined_call_operand.vmem [shape: f32[1,32], index: 2, kind: input, shape index: {}]
  %s3 = inlined_call_operand.vmem [shape: bf16[32,96], index: 3, kind: input, shape index: {}]
  %s4 = inlined_call_operand.vmem [shape: f32[1,96], index: 4, kind: input, shape index: {}]
  %s5 = inlined_call_operand.vmem [shape: f32[16,16], index: 5, kind: input, shape index: {}]
  %s6 = inlined_call_operand.vmem [shape: bf16[32,32], index: 6, kind: input, shape index: {}]
  %s7 = inlined_call_operand.vmem [shape: f32[1,32], index: 7, kind: input, shape index: {}]
  %s8 = inlined_call_operand.vmem [shape: f32[1,32], index: 8, kind: input, shape index: {}]
  %s9 = inlined_call_operand.vmem [shape: f32[1,32], index: 9, kind: input, shape index: {}]
  %s10 = inlined_call_operand.vmem [shape: bf16[32,128], index: 10, kind: input, shape index: {}]
  %s11 = inlined_call_operand.vmem [shape: f32[1,128], index: 11, kind: input, shape index: {}]
  %s12 = inlined_call_operand.vmem [shape: bf16[128,32], index: 12, kind: input, shape index: {}]
  %s13 = inlined_call_operand.vmem [shape: f32[1,32], index: 13, kind: input, shape index: {}]
  %s14 = inlined_call_operand.hbm [shape: f32[16,32], index: 14, kind: output, shape index: {}]
  %s15 = sld [smem:[#allocation0]]
  $region66: #{tpu_custom_call.1} parent=0
    _
  %s17 = ssub.s32 1, %s15
  %s18 = scalar_select 0, %s17, %s15
  $region1: #{tpu_custom_call.1} parent=0
    #allocation2 [shape = 'u8[8192]{0}', space=vmem, size = 0x2000, scoped, tag = 'output window, operand 0, single buffered']
    #allocation3 [shape = 's32[1]{0}', space=sflag, size = 0x4, scoped, tag = 'scoped memory for tpu_custom_call.1']
    %19 = vsyncpa [#allocation3], 0
    // Predicated region
    $region2: #{tpu_custom_call.1} parent=1 // pred_check
      _
    $region3: #{tpu_custom_call.1} parent=1 // pred_check_branch
      %21 = sbr.rel (0) target = $region5
    $region4: #{tpu_custom_call.1} parent=1 // pred_region
      _
    $region5: #{tpu_custom_call.1} parent=1 // pred_fallthru
      _
    // Predicated region
    $region6: #{tpu_custom_call.1} parent=1 // pred_check
      _
    $region7: #{tpu_custom_call.1} parent=1 // pred_check_branch
      %23 = sbr.rel (0) target = $region9
    $region8: #{tpu_custom_call.1} parent=1 // pred_region
      _
    $region9: #{tpu_custom_call.1} parent=1 // pred_fallthru
      _
    // Predicated region
    $region10: #{tpu_custom_call.1} parent=1 // pred_check
      _
    $region11: #{tpu_custom_call.1} parent=1 // pred_check_branch
      %25 = sbr.rel (0) target = $region13
    $region12: #{tpu_custom_call.1} parent=1 // pred_region
      _
    $region13: #{tpu_custom_call.1} parent=1 // pred_fallthru
      _
    // Predicated region
    $region14: #{tpu_custom_call.1} parent=1 // pred_check
      _
    $region15: #{tpu_custom_call.1} parent=1 // pred_check_branch
      %27 = sbr.rel (0) target = $region17
    $region16: #{tpu_custom_call.1} parent=1 // pred_region
      _
    $region17: #{tpu_custom_call.1} parent=1 // pred_fallthru
      _
    // Predicated region
    $region18: #{tpu_custom_call.1} parent=1 // pred_check
      _
    $region19: #{tpu_custom_call.1} parent=1 // pred_check_branch
      %29 = sbr.rel (0) target = $region21
    $region20: #{tpu_custom_call.1} parent=1 // pred_region
      _
    $region21: #{tpu_custom_call.1} parent=1 // pred_fallthru
      _
    // Predicated region
    $region22: #{tpu_custom_call.1} parent=1 // pred_check
      _
    $region23: #{tpu_custom_call.1} parent=1 // pred_check_branch
      %31 = sbr.rel (0) target = $region25
    $region24: #{tpu_custom_call.1} parent=1 // pred_region
      _
    $region25: #{tpu_custom_call.1} parent=1 // pred_fallthru
      _
    // Predicated region
    $region26: #{tpu_custom_call.1} parent=1 // pred_check
      _
    $region27: #{tpu_custom_call.1} parent=1 // pred_check_branch
      %33 = sbr.rel (0) target = $region29
    $region28: #{tpu_custom_call.1} parent=1 // pred_region
      _
    $region29: #{tpu_custom_call.1} parent=1 // pred_fallthru
      _
    // Predicated region
    $region30: #{tpu_custom_call.1} parent=1 // pred_check
      _
    $region31: #{tpu_custom_call.1} parent=1 // pred_check_branch
      %35 = sbr.rel (0) target = $region33
    $region32: #{tpu_custom_call.1} parent=1 // pred_region
      _
    $region33: #{tpu_custom_call.1} parent=1 // pred_fallthru
      _
    // Predicated region
    $region34: #{tpu_custom_call.1} parent=1 // pred_check
      _
    $region35: #{tpu_custom_call.1} parent=1 // pred_check_branch
      %37 = sbr.rel (0) target = $region37
    $region36: #{tpu_custom_call.1} parent=1 // pred_region
      _
    $region37: #{tpu_custom_call.1} parent=1 // pred_fallthru
      _
    // Predicated region
    $region38: #{tpu_custom_call.1} parent=1 // pred_check
      _
    $region39: #{tpu_custom_call.1} parent=1 // pred_check_branch
      %39 = sbr.rel (0) target = $region41
    $region40: #{tpu_custom_call.1} parent=1 // pred_region
      _
    $region41: #{tpu_custom_call.1} parent=1 // pred_fallthru
      _
    // Predicated region
    $region42: #{tpu_custom_call.1} parent=1 // pred_check
      _
    $region43: #{tpu_custom_call.1} parent=1 // pred_check_branch
      %41 = sbr.rel (0) target = $region45
    $region44: #{tpu_custom_call.1} parent=1 // pred_region
      _
    $region45: #{tpu_custom_call.1} parent=1 // pred_fallthru
      _
    // Predicated region
    $region46: #{tpu_custom_call.1} parent=1 // pred_check
      _
    $region47: #{tpu_custom_call.1} parent=1 // pred_check_branch
      %43 = sbr.rel (0) target = $region49
    $region48: #{tpu_custom_call.1} parent=1 // pred_region
      _
    $region49: #{tpu_custom_call.1} parent=1 // pred_fallthru
      _
    // Predicated region
    $region50: #{tpu_custom_call.1} parent=1 // pred_check
      _
    $region51: #{tpu_custom_call.1} parent=1 // pred_check_branch
      %45 = sbr.rel (0) target = $region53
    $region52: #{tpu_custom_call.1} parent=1 // pred_region
      _
    $region53: #{tpu_custom_call.1} parent=1 // pred_fallthru
      _
    // Predicated region
    $region54: #{tpu_custom_call.1} parent=1 // pred_check
      _
    $region55: #{tpu_custom_call.1} parent=1 // pred_check_branch
      %47 = sbr.rel (0) target = $region57
    $region56: #{tpu_custom_call.1} parent=1 // pred_region
      _
    $region57: #{tpu_custom_call.1} parent=1 // pred_fallthru
      _
    %v49 = vld [vmem:[%s0] sm:$0xff]
    %v50 = vld [vmem:[%s0 + $0x8] sm:$0xff]
    %v51 = vld [vmem:[%s1] sm:$0x1]
    %v52 = vld [vmem:[%s2] sm:$0x1]
    %vm53 = vcmask 261120
    %v54 = vsel %vm53, %v49, 0.0
    %55 = vadd.xlane.f32.xlu0 %v54
    %v56 = vpop.xlane.xlu0 %55
    %v57 = vsel %vm53, %v50, 0.0
    %58 = vadd.xlane.f32.xlu0 %v57
    %v59 = vpop.xlane.xlu0 %58
    %v60 = vrcp.pop 32.0
    %v61 = vmul.f32 %v56, %v60
    %v62 = vmul.f32 %v59, %v60
    %v63 = vsub.f32 %v49, %v61
    %v64 = vsub.f32 %v50, %v62
    %v65 = vmul.f32 %v63, %v63
    %v66 = vmul.f32 %v64, %v64
    %v67 = vsel %vm53, %v65, 0.0
    %68 = vadd.xlane.f32.xlu0 %v67
    %v69 = vpop.xlane.xlu0 %68
    %v70 = vsel %vm53, %v66, 0.0
    %71 = vadd.xlane.f32.xlu0 %v70
    %v72 = vpop.xlane.xlu0 %71
    %v73 = vmul.f32 %v69, %v60
    %v74 = vmul.f32 %v72, %v60
    %v75 = vadd.f32 %v73, 1e-05
    %v76 = vadd.f32 %v74, 1e-05
    %v77 = vrsqrt.pop %v75
    %v78 = vrsqrt.pop %v76
    %v79 = vmul.f32 %v63, %v77
    %v80 = vmul.f32 %v64, %v78
    %v82 = vlaneseq
    %v83 = vshrl.u32 %v82, 7
    %v84 = vsub.s32 0, %v83
    %v85 = vrot.slane %v51, %v84
    %v87 = vmul.f32 %v79, %v85
    %v88 = vmul.f32 %v80, %v85
    %v90 = vlaneseq
    %v91 = vshrl.u32 %v90, 7
    %v92 = vsub.s32 0, %v91
    %v93 = vrot.slane %v52, %v92
    %v95 = vadd.f32 %v87, %v93
    %v96 = vadd.f32 %v88, %v93
    %v97 = vpack.c.bf16 %v96, %v95
    %v98 = vld [vmem:[%s3] sm:$0xf]
    %v99 = vld [vmem:[%s3 + $0x4] sm:$0xf]
    %v100 = vld [vmem:[%s3 + $0x8] sm:$0xf]
    %v101 = vld [vmem:[%s3 + $0xc] sm:$0xf]
    %v102 = vld [vmem:[%s4] sm:$0x1]
    %v104 = vlaneseq
    %v105 = vshrl.u32 %v104, 7
    %v106 = vsub.s32 0, %v105
    %v107 = vrot.slane %v102, %v106
    %v113 = vunpack.c.l.b16 %v98
    %v114 = vunpack.c.l.b16 %v99
    %v115 = vunpack.c.l.b16 %v100
    %v116 = vunpack.c.l.b16 %v101
    %v117 = vpack.c.b16 %v114, %v113
    %v118 = vpack.c.b16 %v116, %v115
    %v122 = vsel %vm53, %v97, 0
    %124 = vmatprep.subr.bf16.mxu0 0
    %125 = vmatpush1.bf16.msra.mxu0 %v117
    %126 = vmatprep.subr.bf16.mxu0 0
    %127 = vmatpush1.bf16.msra.mxu0 %v118
    %128 = vmatprep.subr.bf16.mxu0 0
    %129 = vmatpush1.bf16.msra.mxu0 0
    %130 = vmatprep.subr.bf16.mxu0 0
    %131 = vmatpush1.bf16.msra.mxu0 0
    %132 = vmatprep.subr.bf16.mxu0 0
    %133 = vmatpush1.bf16.msra.mxu0 0
    %134 = vmatprep.subr.bf16.mxu0 0
    %135 = vmatpush1.bf16.msra.mxu0 0
    %136 = vmatprep.subr.bf16.mxu0 0
    %137 = vmatpush1.bf16.msra.mxu0 0
    %138 = vmatprep.subr.bf16.mxu0 0
    %139 = vmatpush1.bf16.msra.mxu0 0
    %140 = vmatprep.subr.bf16.mxu0 0
    %141 = vmatpush1.bf16.msra.mxu0 0
    %142 = vmatprep.subr.bf16.mxu0 0
    %143 = vmatpush1.bf16.msra.mxu0 0
    %144 = vmatprep.subr.bf16.mxu0 0
    %145 = vmatpush1.bf16.msra.mxu0 0
    %146 = vmatprep.subr.bf16.mxu0 0
    %147 = vmatpush1.bf16.msra.mxu0 0
    %148 = vmatprep.subr.bf16.mxu0 0
    %149 = vmatpush1.bf16.msra.mxu0 0
    %150 = vmatprep.subr.bf16.mxu0 0
    %151 = vmatpush1.bf16.msra.mxu0 0
    %152 = vmatprep.subr.bf16.mxu0 0
    %153 = vmatpush1.bf16.msra.mxu0 0
    %154 = vmatprep.subr.bf16.mxu0 0
    %155 = vmatpush1.bf16.msra.mxu0 0
    %156 = vmatprep.mubr.bf16.mxu0 0
    %157 = vmatmul.mubr.bf16.gmra.mrb[0].mxu0 %v122
    %v158 = vpop.f32.mrb[0].mxu0
    %v159 = vadd.f32 %v107, %v158
    %v160 = vpop.f32.mrb[0].mxu0
    %v161 = vpop.f32.mrb[0].mxu0
    %v162 = vadd.f32 %v107, %v161
    %v163 = vpop.f32.mrb[0].mxu0
    %164 = vdwg.mxu0
    %167 = vrot.lane.b32.xlu0 %v159, 120
    %v168 = vpop.permute.xlu0 %167
    %169 = vrot.lane.b32.xlu0 %v162, 120
    %v170 = vpop.permute.xlu0 %169
    %173 = vrot.lane.b32.xlu0 %v159, 112
    %v174 = vpop.permute.xlu0 %173
    %175 = vrot.lane.b32.xlu0 %v162, 112
    %v176 = vpop.permute.xlu0 %175
    %179 = vrot.lane.b32.xlu0 %v159, 104
    %v180 = vpop.permute.xlu0 %179
    %181 = vrot.lane.b32.xlu0 %v162, 104
    %v182 = vpop.permute.xlu0 %181
    %v185 = vpack.c.bf16 %v162, %v159
    %v186 = vpack.c.bf16 %v170, %v168
    %v187 = vpack.c.bf16 %v176, %v174
    %v188 = vpack.c.bf16 %v182, %v180
    %v189 = vld [vmem:[%s5] sm:$0xff]
    %v190 = vld [vmem:[%s5 + $0x8] sm:$0xff]
    %192 = vrot.lane.b32.xlu0 %v185, 96
    %v193 = vpop.permute.xlu0 %192
    %vm194 = vcmask 64512
    %v196 = vsel %vm194, %v185, 0
    %v199 = vsel %vm194, %v193, 0
    %201 = vmatprep.subr.bf16.mxu0 0
    %202 = vmatpush1.bf16.xpose.msra.mxu0 %v199
    %203 = vmatprep.subr.bf16.mxu0 0
    %204 = vmatpush1.bf16.xpose.msra.mxu0 0
    %205 = vmatprep.subr.bf16.mxu0 0
    %206 = vmatpush1.bf16.xpose.msra.mxu0 0
    %207 = vmatprep.subr.bf16.mxu0 0
    %208 = vmatpush1.bf16.xpose.msra.mxu0 0
    %209 = vmatprep.subr.bf16.mxu0 0
    %210 = vmatpush1.bf16.xpose.msra.mxu0 0
    %211 = vmatprep.subr.bf16.mxu0 0
    %212 = vmatpush1.bf16.xpose.msra.mxu0 0
    %213 = vmatprep.subr.bf16.mxu0 0
    %214 = vmatpush1.bf16.xpose.msra.mxu0 0
    %215 = vmatprep.subr.bf16.mxu0 0
    %216 = vmatpush1.bf16.xpose.msra.mxu0 0
    %217 = vmatprep.subr.bf16.mxu0 0
    %218 = vmatpush1.bf16.xpose.msra.mxu0 0
    %219 = vmatprep.subr.bf16.mxu0 0
    %220 = vmatpush1.bf16.xpose.msra.mxu0 0
    %221 = vmatprep.subr.bf16.mxu0 0
    %222 = vmatpush1.bf16.xpose.msra.mxu0 0
    %223 = vmatprep.subr.bf16.mxu0 0
    %224 = vmatpush1.bf16.xpose.msra.mxu0 0
    %225 = vmatprep.subr.bf16.mxu0 0
    %226 = vmatpush1.bf16.xpose.msra.mxu0 0
    %227 = vmatprep.subr.bf16.mxu0 0
    %228 = vmatpush1.bf16.xpose.msra.mxu0 0
    %229 = vmatprep.subr.bf16.mxu0 0
    %230 = vmatpush1.bf16.xpose.msra.mxu0 0
    %231 = vmatprep.subr.bf16.mxu0 0
    %232 = vmatpush1.bf16.xpose.msra.mxu0 0
    %233 = vmatprep.mubr.bf16.mxu0 0
    %234 = vmatmul.mubr.bf16.gmra.mrb[0].mxu0 %v196
    %v235 = vpop.f32.mrb[0].mxu0
    %v236 = vadd.f32 %v189, %v235
    %v237 = vpop.f32.mrb[0].mxu0
    %v238 = vpop.f32.mrb[0].mxu0
    %v239 = vadd.f32 %v190, %v238
    %v240 = vpop.f32.mrb[0].mxu0
    %241 = vdwg.mxu0
    %243 = vrot.lane.b32.xlu0 %v186, 96
    %v244 = vpop.permute.xlu0 %243
    %v246 = vsel %vm194, %v186, 0
    %v249 = vsel %vm194, %v244, 0
    %251 = vmatprep.subr.bf16.mxu0 0
    %252 = vmatpush1.bf16.xpose.msra.mxu0 %v249
    %253 = vmatprep.subr.bf16.mxu0 0
    %254 = vmatpush1.bf16.xpose.msra.mxu0 0
    %255 = vmatprep.subr.bf16.mxu0 0
    %256 = vmatpush1.bf16.xpose.msra.mxu0 0
    %257 = vmatprep.subr.bf16.mxu0 0
    %258 = vmatpush1.bf16.xpose.msra.mxu0 0
    %259 = vmatprep.subr.bf16.mxu0 0
    %260 = vmatpush1.bf16.xpose.msra.mxu0 0
    %261 = vmatprep.subr.bf16.mxu0 0
    %262 = vmatpush1.bf16.xpose.msra.mxu0 0
    %263 = vmatprep.subr.bf16.mxu0 0
    %264 = vmatpush1.bf16.xpose.msra.mxu0 0
    %265 = vmatprep.subr.bf16.mxu0 0
    %266 = vmatpush1.bf16.xpose.msra.mxu0 0
    %267 = vmatprep.subr.bf16.mxu0 0
    %268 = vmatpush1.bf16.xpose.msra.mxu0 0
    %269 = vmatprep.subr.bf16.mxu0 0
    %270 = vmatpush1.bf16.xpose.msra.mxu0 0
    %271 = vmatprep.subr.bf16.mxu0 0
    %272 = vmatpush1.bf16.xpose.msra.mxu0 0
    %273 = vmatprep.subr.bf16.mxu0 0
    %274 = vmatpush1.bf16.xpose.msra.mxu0 0
    %275 = vmatprep.subr.bf16.mxu0 0
    %276 = vmatpush1.bf16.xpose.msra.mxu0 0
    %277 = vmatprep.subr.bf16.mxu0 0
    %278 = vmatpush1.bf16.xpose.msra.mxu0 0
    %279 = vmatprep.subr.bf16.mxu0 0
    %280 = vmatpush1.bf16.xpose.msra.mxu0 0
    %281 = vmatprep.subr.bf16.mxu0 0
    %282 = vmatpush1.bf16.xpose.msra.mxu0 0
    %283 = vmatprep.mubr.bf16.mxu0 0
    %284 = vmatmul.mubr.bf16.gmra.mrb[0].mxu0 %v246
    %v285 = vpop.f32.mrb[0].mxu0
    %v286 = vadd.f32 %v189, %v285
    %v287 = vpop.f32.mrb[0].mxu0
    %v288 = vpop.f32.mrb[0].mxu0
    %v289 = vadd.f32 %v190, %v288
    %v290 = vpop.f32.mrb[0].mxu0
    %291 = vdwg.mxu0
    %293 = vrot.lane.b32.xlu0 %v187, 96
    %v294 = vpop.permute.xlu0 %293
    %v296 = vsel %vm194, %v187, 0
    %v299 = vsel %vm194, %v294, 0
    %301 = vmatprep.subr.bf16.mxu0 0
    %302 = vmatpush1.bf16.xpose.msra.mxu0 %v299
    %303 = vmatprep.subr.bf16.mxu0 0
    %304 = vmatpush1.bf16.xpose.msra.mxu0 0
    %305 = vmatprep.subr.bf16.mxu0 0
    %306 = vmatpush1.bf16.xpose.msra.mxu0 0
    %307 = vmatprep.subr.bf16.mxu0 0
    %308 = vmatpush1.bf16.xpose.msra.mxu0 0
    %309 = vmatprep.subr.bf16.mxu0 0
    %310 = vmatpush1.bf16.xpose.msra.mxu0 0
    %311 = vmatprep.subr.bf16.mxu0 0
    %312 = vmatpush1.bf16.xpose.msra.mxu0 0
    %313 = vmatprep.subr.bf16.mxu0 0
    %314 = vmatpush1.bf16.xpose.msra.mxu0 0
    %315 = vmatprep.subr.bf16.mxu0 0
    %316 = vmatpush1.bf16.xpose.msra.mxu0 0
    %317 = vmatprep.subr.bf16.mxu0 0
    %318 = vmatpush1.bf16.xpose.msra.mxu0 0
    %319 = vmatprep.subr.bf16.mxu0 0
    %320 = vmatpush1.bf16.xpose.msra.mxu0 0
    %321 = vmatprep.subr.bf16.mxu0 0
    %322 = vmatpush1.bf16.xpose.msra.mxu0 0
    %323 = vmatprep.subr.bf16.mxu0 0
    %324 = vmatpush1.bf16.xpose.msra.mxu0 0
    %325 = vmatprep.subr.bf16.mxu0 0
    %326 = vmatpush1.bf16.xpose.msra.mxu0 0
    %327 = vmatprep.subr.bf16.mxu0 0
    %328 = vmatpush1.bf16.xpose.msra.mxu0 0
    %329 = vmatprep.subr.bf16.mxu0 0
    %330 = vmatpush1.bf16.xpose.msra.mxu0 0
    %331 = vmatprep.subr.bf16.mxu0 0
    %332 = vmatpush1.bf16.xpose.msra.mxu0 0
    %333 = vmatprep.mubr.bf16.mxu0 0
    %334 = vmatmul.mubr.bf16.gmra.mrb[0].mxu0 %v296
    %v335 = vpop.f32.mrb[0].mxu0
    %v336 = vadd.f32 %v189, %v335
    %v337 = vpop.f32.mrb[0].mxu0
    %v338 = vpop.f32.mrb[0].mxu0
    %v339 = vadd.f32 %v190, %v338
    %v340 = vpop.f32.mrb[0].mxu0
    %341 = vdwg.mxu0
    %343 = vrot.lane.b32.xlu0 %v188, 96
    %v344 = vpop.permute.xlu0 %343
    %v346 = vsel %vm194, %v188, 0
    %v349 = vsel %vm194, %v344, 0
    %351 = vmatprep.subr.bf16.mxu0 0
    %352 = vmatpush1.bf16.xpose.msra.mxu0 %v349
    %353 = vmatprep.subr.bf16.mxu0 0
    %354 = vmatpush1.bf16.xpose.msra.mxu0 0
    %355 = vmatprep.subr.bf16.mxu0 0
    %356 = vmatpush1.bf16.xpose.msra.mxu0 0
    %357 = vmatprep.subr.bf16.mxu0 0
    %358 = vmatpush1.bf16.xpose.msra.mxu0 0
    %359 = vmatprep.subr.bf16.mxu0 0
    %360 = vmatpush1.bf16.xpose.msra.mxu0 0
    %361 = vmatprep.subr.bf16.mxu0 0
    %362 = vmatpush1.bf16.xpose.msra.mxu0 0
    %363 = vmatprep.subr.bf16.mxu0 0
    %364 = vmatpush1.bf16.xpose.msra.mxu0 0
    %365 = vmatprep.subr.bf16.mxu0 0
    %366 = vmatpush1.bf16.xpose.msra.mxu0 0
    %367 = vmatprep.subr.bf16.mxu0 0
    %368 = vmatpush1.bf16.xpose.msra.mxu0 0
    %369 = vmatprep.subr.bf16.mxu0 0
    %370 = vmatpush1.bf16.xpose.msra.mxu0 0
    %371 = vmatprep.subr.bf16.mxu0 0
    %372 = vmatpush1.bf16.xpose.msra.mxu0 0
    %373 = vmatprep.subr.bf16.mxu0 0
    %374 = vmatpush1.bf16.xpose.msra.mxu0 0
    %375 = vmatprep.subr.bf16.mxu0 0
    %376 = vmatpush1.bf16.xpose.msra.mxu0 0
    %377 = vmatprep.subr.bf16.mxu0 0
    %378 = vmatpush1.bf16.xpose.msra.mxu0 0
    %379 = vmatprep.subr.bf16.mxu0 0
    %380 = vmatpush1.bf16.xpose.msra.mxu0 0
    %381 = vmatprep.subr.bf16.mxu0 0
    %382 = vmatpush1.bf16.xpose.msra.mxu0 0
    %383 = vmatprep.mubr.bf16.mxu0 0
    %384 = vmatmul.mubr.bf16.gmra.mrb[0].mxu0 %v346
    %v385 = vpop.f32.mrb[0].mxu0
    %v386 = vadd.f32 %v189, %v385
    %v387 = vpop.f32.mrb[0].mxu0
    %v388 = vpop.f32.mrb[0].mxu0
    %v389 = vadd.f32 %v190, %v388
    %v390 = vpop.f32.mrb[0].mxu0
    %391 = vdwg.mxu0
    %vm392 = vcmask 130048
    %v393 = vsel %vm392, %v236, -inf
    %394 = vmax.xlane.f32.xlu0 %v393
    %v395 = vpop.xlane.xlu0 %394
    %v396 = vsel %vm392, %v239, -inf
    %397 = vmax.xlane.f32.xlu0 %v396
    %v398 = vpop.xlane.xlu0 %397
    %v399 = vsel %vm392, %v286, -inf
    %400 = vmax.xlane.f32.xlu0 %v399
    %v401 = vpop.xlane.xlu0 %400
    %v402 = vsel %vm392, %v289, -inf
    %403 = vmax.xlane.f32.xlu0 %v402
    %v404 = vpop.xlane.xlu0 %403
    %v405 = vsel %vm392, %v336, -inf
    %406 = vmax.xlane.f32.xlu0 %v405
    %v407 = vpop.xlane.xlu0 %406
    %v408 = vsel %vm392, %v339, -inf
    %409 = vmax.xlane.f32.xlu0 %v408
    %v410 = vpop.xlane.xlu0 %409
    %v411 = vsel %vm392, %v386, -inf
    %412 = vmax.xlane.f32.xlu0 %v411
    %v413 = vpop.xlane.xlu0 %412
    %v414 = vsel %vm392, %v389, -inf
    %415 = vmax.xlane.f32.xlu0 %v414
    %v416 = vpop.xlane.xlu0 %415
    %v417 = vsub.f32 %v236, %v395
    %v418 = vsub.f32 %v239, %v398
    %v419 = vsub.f32 %v286, %v401
    %v420 = vsub.f32 %v289, %v404
    %v421 = vsub.f32 %v336, %v407
    %v422 = vsub.f32 %v339, %v410
    %v423 = vsub.f32 %v386, %v413
    %v424 = vsub.f32 %v389, %v416
    %v425 = vmul.f32 %v417, 1.442695
    %v426 = vpow.pop %v425
    %v427 = vmul.f32 %v418, 1.442695
    %v428 = vpow.pop %v427
    %v429 = vmul.f32 %v419, 1.442695
    %v430 = vpow.pop %v429
    %v431 = vmul.f32 %v420, 1.442695
    %v432 = vpow.pop %v431
    %v433 = vmul.f32 %v421, 1.442695
    %v434 = vpow.pop %v433
    %v435 = vmul.f32 %v422, 1.442695
    %v436 = vpow.pop %v435
    %v437 = vmul.f32 %v423, 1.442695
    %v438 = vpow.pop %v437
    %v439 = vmul.f32 %v424, 1.442695
    %v440 = vpow.pop %v439
    %v441 = vsel %vm392, %v426, 0.0
    %442 = vadd.xlane.f32.xlu0 %v441
    %v443 = vpop.xlane.xlu0 %442
    %v444 = vsel %vm392, %v428, 0.0
    %445 = vadd.xlane.f32.xlu0 %v444
    %v446 = vpop.xlane.xlu0 %445
    %v447 = vsel %vm392, %v430, 0.0
    %448 = vadd.xlane.f32.xlu0 %v447
    %v449 = vpop.xlane.xlu0 %448
    %v450 = vsel %vm392, %v432, 0.0
    %451 = vadd.xlane.f32.xlu0 %v450
    %v452 = vpop.xlane.xlu0 %451
    %v453 = vsel %vm392, %v434, 0.0
    %454 = vadd.xlane.f32.xlu0 %v453
    %v455 = vpop.xlane.xlu0 %454
    %v456 = vsel %vm392, %v436, 0.0
    %457 = vadd.xlane.f32.xlu0 %v456
    %v458 = vpop.xlane.xlu0 %457
    %v459 = vsel %vm392, %v438, 0.0
    %460 = vadd.xlane.f32.xlu0 %v459
    %v461 = vpop.xlane.xlu0 %460
    %v462 = vsel %vm392, %v440, 0.0
    %463 = vadd.xlane.f32.xlu0 %v462
    %v464 = vpop.xlane.xlu0 %463
    %v465 = vrcp.pop %v443
    %v466 = vrcp.pop %v446
    %v467 = vrcp.pop %v449
    %v468 = vrcp.pop %v452
    %v469 = vrcp.pop %v455
    %v470 = vrcp.pop %v458
    %v471 = vrcp.pop %v461
    %v472 = vrcp.pop %v464
    %v473 = vmul.f32 %v426, %v465
    %v474 = vmul.f32 %v428, %v466
    %v475 = vmul.f32 %v430, %v467
    %v476 = vmul.f32 %v432, %v468
    %v477 = vmul.f32 %v434, %v469
    %v478 = vmul.f32 %v436, %v470
    %v479 = vmul.f32 %v438, %v471
    %v480 = vmul.f32 %v440, %v472
    %v481 = vpack.c.bf16 %v474, %v473
    %v482 = vpack.c.bf16 %v476, %v475
    %v483 = vpack.c.bf16 %v478, %v477
    %v484 = vpack.c.bf16 %v480, %v479
    %485 = vrot.lane.b32.xlu0 %v185, 64
    %v486 = vpop.permute.xlu0 %485
    %v489 = vsel %vm392, %v481, 0
    %491 = vmatprep.subr.bf16.mxu0 0
    %492 = vmatpush1.bf16.msra.mxu0 %v486
    %493 = vmatprep.subr.bf16.mxu0 0
    %494 = vmatpush1.bf16.msra.mxu0 0
    %495 = vmatprep.subr.bf16.mxu0 0
    %496 = vmatpush1.bf16.msra.mxu0 0
    %497 = vmatprep.subr.bf16.mxu0 0
    %498 = vmatpush1.bf16.msra.mxu0 0
    %499 = vmatprep.subr.bf16.mxu0 0
    %500 = vmatpush1.bf16.msra.mxu0 0
    %501 = vmatprep.subr.bf16.mxu0 0
    %502 = vmatpush1.bf16.msra.mxu0 0
    %503 = vmatprep.subr.bf16.mxu0 0
    %504 = vmatpush1.bf16.msra.mxu0 0
    %505 = vmatprep.subr.bf16.mxu0 0
    %506 = vmatpush1.bf16.msra.mxu0 0
    %507 = vmatprep.subr.bf16.mxu0 0
    %508 = vmatpush1.bf16.msra.mxu0 0
    %509 = vmatprep.subr.bf16.mxu0 0
    %510 = vmatpush1.bf16.msra.mxu0 0
    %511 = vmatprep.subr.bf16.mxu0 0
    %512 = vmatpush1.bf16.msra.mxu0 0
    %513 = vmatprep.subr.bf16.mxu0 0
    %514 = vmatpush1.bf16.msra.mxu0 0
    %515 = vmatprep.subr.bf16.mxu0 0
    %516 = vmatpush1.bf16.msra.mxu0 0
    %517 = vmatprep.subr.bf16.mxu0 0
    %518 = vmatpush1.bf16.msra.mxu0 0
    %519 = vmatprep.subr.bf16.mxu0 0
    %520 = vmatpush1.bf16.msra.mxu0 0
    %521 = vmatprep.subr.bf16.mxu0 0
    %522 = vmatpush1.bf16.msra.mxu0 0
    %523 = vmatprep.mubr.bf16.mxu0 0
    %524 = vmatmul.mubr.bf16.gmra.mrb[0].mxu0 %v489
    %v525 = vpop.f32.mrb[0].mxu0
    %v526 = vadd.f32 0.0, %v525
    %v527 = vpop.f32.mrb[0].mxu0
    %v528 = vpop.f32.mrb[0].mxu0
    %v529 = vadd.f32 0.0, %v528
    %v530 = vpop.f32.mrb[0].mxu0
    %531 = vdwg.mxu0
    %532 = vrot.lane.b32.xlu0 %v186, 64
    %v533 = vpop.permute.xlu0 %532
    %v536 = vsel %vm392, %v482, 0
    %538 = vmatprep.subr.bf16.mxu0 0
    %539 = vmatpush1.bf16.msra.mxu0 %v533
    %540 = vmatprep.subr.bf16.mxu0 0
    %541 = vmatpush1.bf16.msra.mxu0 0
    %542 = vmatprep.subr.bf16.mxu0 0
    %543 = vmatpush1.bf16.msra.mxu0 0
    %544 = vmatprep.subr.bf16.mxu0 0
    %545 = vmatpush1.bf16.msra.mxu0 0
    %546 = vmatprep.subr.bf16.mxu0 0
    %547 = vmatpush1.bf16.msra.mxu0 0
    %548 = vmatprep.subr.bf16.mxu0 0
    %549 = vmatpush1.bf16.msra.mxu0 0
    %550 = vmatprep.subr.bf16.mxu0 0
    %551 = vmatpush1.bf16.msra.mxu0 0
    %552 = vmatprep.subr.bf16.mxu0 0
    %553 = vmatpush1.bf16.msra.mxu0 0
    %554 = vmatprep.subr.bf16.mxu0 0
    %555 = vmatpush1.bf16.msra.mxu0 0
    %556 = vmatprep.subr.bf16.mxu0 0
    %557 = vmatpush1.bf16.msra.mxu0 0
    %558 = vmatprep.subr.bf16.mxu0 0
    %559 = vmatpush1.bf16.msra.mxu0 0
    %560 = vmatprep.subr.bf16.mxu0 0
    %561 = vmatpush1.bf16.msra.mxu0 0
    %562 = vmatprep.subr.bf16.mxu0 0
    %563 = vmatpush1.bf16.msra.mxu0 0
    %564 = vmatprep.subr.bf16.mxu0 0
    %565 = vmatpush1.bf16.msra.mxu0 0
    %566 = vmatprep.subr.bf16.mxu0 0
    %567 = vmatpush1.bf16.msra.mxu0 0
    %568 = vmatprep.subr.bf16.mxu0 0
    %569 = vmatpush1.bf16.msra.mxu0 0
    %570 = vmatprep.mubr.bf16.mxu0 0
    %571 = vmatmul.mubr.bf16.gmra.mrb[0].mxu0 %v536
    %v572 = vpop.f32.mrb[0].mxu0
    %v573 = vadd.f32 0.0, %v572
    %v574 = vpop.f32.mrb[0].mxu0
    %v575 = vpop.f32.mrb[0].mxu0
    %v576 = vadd.f32 0.0, %v575
    %v577 = vpop.f32.mrb[0].mxu0
    %578 = vdwg.mxu0
    %579 = vrot.lane.b32.xlu0 %v187, 64
    %v580 = vpop.permute.xlu0 %579
    %v583 = vsel %vm392, %v483, 0
    %585 = vmatprep.subr.bf16.mxu0 0
    %586 = vmatpush1.bf16.msra.mxu0 %v580
    %587 = vmatprep.subr.bf16.mxu0 0
    %588 = vmatpush1.bf16.msra.mxu0 0
    %589 = vmatprep.subr.bf16.mxu0 0
    %590 = vmatpush1.bf16.msra.mxu0 0
    %591 = vmatprep.subr.bf16.mxu0 0
    %592 = vmatpush1.bf16.msra.mxu0 0
    %593 = vmatprep.subr.bf16.mxu0 0
    %594 = vmatpush1.bf16.msra.mxu0 0
    %595 = vmatprep.subr.bf16.mxu0 0
    %596 = vmatpush1.bf16.msra.mxu0 0
    %597 = vmatprep.subr.bf16.mxu0 0
    %598 = vmatpush1.bf16.msra.mxu0 0
    %599 = vmatprep.subr.bf16.mxu0 0
    %600 = vmatpush1.bf16.msra.mxu0 0
    %601 = vmatprep.subr.bf16.mxu0 0
    %602 = vmatpush1.bf16.msra.mxu0 0
    %603 = vmatprep.subr.bf16.mxu0 0
    %604 = vmatpush1.bf16.msra.mxu0 0
    %605 = vmatprep.subr.bf16.mxu0 0
    %606 = vmatpush1.bf16.msra.mxu0 0
    %607 = vmatprep.subr.bf16.mxu0 0
    %608 = vmatpush1.bf16.msra.mxu0 0
    %609 = vmatprep.subr.bf16.mxu0 0
    %610 = vmatpush1.bf16.msra.mxu0 0
    %611 = vmatprep.subr.bf16.mxu0 0
    %612 = vmatpush1.bf16.msra.mxu0 0
    %613 = vmatprep.subr.bf16.mxu0 0
    %614 = vmatpush1.bf16.msra.mxu0 0
    %615 = vmatprep.subr.bf16.mxu0 0
    %616 = vmatpush1.bf16.msra.mxu0 0
    %617 = vmatprep.mubr.bf16.mxu0 0
    %618 = vmatmul.mubr.bf16.gmra.mrb[0].mxu0 %v583
    %v619 = vpop.f32.mrb[0].mxu0
    %v620 = vadd.f32 0.0, %v619
    %v621 = vpop.f32.mrb[0].mxu0
    %v622 = vpop.f32.mrb[0].mxu0
    %v623 = vadd.f32 0.0, %v622
    %v624 = vpop.f32.mrb[0].mxu0
    %625 = vdwg.mxu0
    %626 = vrot.lane.b32.xlu0 %v188, 64
    %v627 = vpop.permute.xlu0 %626
    %v630 = vsel %vm392, %v484, 0
    %632 = vmatprep.subr.bf16.mxu0 0
    %633 = vmatpush1.bf16.msra.mxu0 %v627
    %634 = vmatprep.subr.bf16.mxu0 0
    %635 = vmatpush1.bf16.msra.mxu0 0
    %636 = vmatprep.subr.bf16.mxu0 0
    %637 = vmatpush1.bf16.msra.mxu0 0
    %638 = vmatprep.subr.bf16.mxu0 0
    %639 = vmatpush1.bf16.msra.mxu0 0
    %640 = vmatprep.subr.bf16.mxu0 0
    %641 = vmatpush1.bf16.msra.mxu0 0
    %642 = vmatprep.subr.bf16.mxu0 0
    %643 = vmatpush1.bf16.msra.mxu0 0
    %644 = vmatprep.subr.bf16.mxu0 0
    %645 = vmatpush1.bf16.msra.mxu0 0
    %646 = vmatprep.subr.bf16.mxu0 0
    %647 = vmatpush1.bf16.msra.mxu0 0
    %648 = vmatprep.subr.bf16.mxu0 0
    %649 = vmatpush1.bf16.msra.mxu0 0
    %650 = vmatprep.subr.bf16.mxu0 0
    %651 = vmatpush1.bf16.msra.mxu0 0
    %652 = vmatprep.subr.bf16.mxu0 0
    %653 = vmatpush1.bf16.msra.mxu0 0
    %654 = vmatprep.subr.bf16.mxu0 0
    %655 = vmatpush1.bf16.msra.mxu0 0
    %656 = vmatprep.subr.bf16.mxu0 0
    %657 = vmatpush1.bf16.msra.mxu0 0
    %658 = vmatprep.subr.bf16.mxu0 0
    %659 = vmatpush1.bf16.msra.mxu0 0
    %660 = vmatprep.subr.bf16.mxu0 0
    %661 = vmatpush1.bf16.msra.mxu0 0
    %662 = vmatprep.subr.bf16.mxu0 0
    %663 = vmatpush1.bf16.msra.mxu0 0
    %664 = vmatprep.mubr.bf16.mxu0 0
    %665 = vmatmul.mubr.bf16.gmra.mrb[0].mxu0 %v630
    %v666 = vpop.f32.mrb[0].mxu0
    %v667 = vadd.f32 0.0, %v666
    %v668 = vpop.f32.mrb[0].mxu0
    %v669 = vpop.f32.mrb[0].mxu0
    %v670 = vadd.f32 0.0, %v669
    %v671 = vpop.f32.mrb[0].mxu0
    %672 = vdwg.mxu0
    %675 = vrot.lane.b32.xlu0 %v573, 8
    %v676 = vpop.permute.xlu0 %675
    %677 = vrot.lane.b32.xlu0 %v576, 8
    %v678 = vpop.permute.xlu0 %677
    %683 = vrot.lane.b32.xlu0 %v620, 16
    %v684 = vpop.permute.xlu0 %683
    %685 = vrot.lane.b32.xlu0 %v623, 16
    %v686 = vpop.permute.xlu0 %685
    %691 = vrot.lane.b32.xlu0 %v667, 24
    %v692 = vpop.permute.xlu0 %691
    %693 = vrot.lane.b32.xlu0 %v670, 24
    %v694 = vpop.permute.xlu0 %693
    %v697 = vsel %vm194, %v526, %v676
    %v698 = vsel %vm194, %v529, %v678
    %v699 = vsel %vm392, %v697, %v684
    %v700 = vsel %vm392, %v698, %v686
    %vm701 = vcmask 195584
    %v702 = vsel %vm701, %v699, %v692
    %v703 = vsel %vm701, %v700, %v694
    %v704 = vpack.c.bf16 %v703, %v702
    %v705 = vld [vmem:[%s6] sm:$0xf]
    %v706 = vld [vmem:[%s6 + $0x4] sm:$0xf]
    %v707 = vld [vmem:[%s6 + $0x8] sm:$0xf]
    %v708 = vld [vmem:[%s6 + $0xc] sm:$0xf]
    %v709 = vld [vmem:[%s7] sm:$0x1]
    %v711 = vlaneseq
    %v712 = vshrl.u32 %v711, 7
    %v713 = vsub.s32 0, %v712
    %v714 = vrot.slane %v709, %v713
    %v720 = vunpack.c.l.b16 %v705
    %v721 = vunpack.c.l.b16 %v706
    %v722 = vunpack.c.l.b16 %v707
    %v723 = vunpack.c.l.b16 %v708
    %v724 = vpack.c.b16 %v721, %v720
    %v725 = vpack.c.b16 %v723, %v722
    %v729 = vsel %vm53, %v704, 0
    %731 = vmatprep.subr.bf16.mxu0 0
    %732 = vmatpush1.bf16.msra.mxu0 %v724
    %733 = vmatprep.subr.bf16.mxu0 0
    %734 = vmatpush1.bf16.msra.mxu0 %v725
    %735 = vmatprep.subr.bf16.mxu0 0
    %736 = vmatpush1.bf16.msra.mxu0 0
    %737 = vmatprep.subr.bf16.mxu0 0
    %738 = vmatpush1.bf16.msra.mxu0 0
    %739 = vmatprep.subr.bf16.mxu0 0
    %740 = vmatpush1.bf16.msra.mxu0 0
    %741 = vmatprep.subr.bf16.mxu0 0
    %742 = vmatpush1.bf16.msra.mxu0 0
    %743 = vmatprep.subr.bf16.mxu0 0
    %744 = vmatpush1.bf16.msra.mxu0 0
    %745 = vmatprep.subr.bf16.mxu0 0
    %746 = vmatpush1.bf16.msra.mxu0 0
    %747 = vmatprep.subr.bf16.mxu0 0
    %748 = vmatpush1.bf16.msra.mxu0 0
    %749 = vmatprep.subr.bf16.mxu0 0
    %750 = vmatpush1.bf16.msra.mxu0 0
    %751 = vmatprep.subr.bf16.mxu0 0
    %752 = vmatpush1.bf16.msra.mxu0 0
    %753 = vmatprep.subr.bf16.mxu0 0
    %754 = vmatpush1.bf16.msra.mxu0 0
    %755 = vmatprep.subr.bf16.mxu0 0
    %756 = vmatpush1.bf16.msra.mxu0 0
    %757 = vmatprep.subr.bf16.mxu0 0
    %758 = vmatpush1.bf16.msra.mxu0 0
    %759 = vmatprep.subr.bf16.mxu0 0
    %760 = vmatpush1.bf16.msra.mxu0 0
    %761 = vmatprep.subr.bf16.mxu0 0
    %762 = vmatpush1.bf16.msra.mxu0 0
    %763 = vmatprep.mubr.bf16.mxu0 0
    %764 = vmatmul.mubr.bf16.gmra.mrb[0].mxu0 %v729
    %v765 = vpop.f32.mrb[0].mxu0
    %v766 = vadd.f32 %v714, %v765
    %v767 = vpop.f32.mrb[0].mxu0
    %v768 = vpop.f32.mrb[0].mxu0
    %v769 = vadd.f32 %v714, %v768
    %v770 = vpop.f32.mrb[0].mxu0
    %771 = vdwg.mxu0
    %v772 = vadd.f32 %v49, %v766
    %v773 = vadd.f32 %v50, %v769
    %v774 = vld [vmem:[%s8] sm:$0x1]
    %v775 = vld [vmem:[%s9] sm:$0x1]
    %v776 = vsel %vm53, %v772, 0.0
    %777 = vadd.xlane.f32.xlu0 %v776
    %v778 = vpop.xlane.xlu0 %777
    %v779 = vsel %vm53, %v773, 0.0
    %780 = vadd.xlane.f32.xlu0 %v779
    %v781 = vpop.xlane.xlu0 %780
    %v782 = vmul.f32 %v778, %v60
    %v783 = vmul.f32 %v781, %v60
    %v784 = vsub.f32 %v772, %v782
    %v785 = vsub.f32 %v773, %v783
    %v786 = vmul.f32 %v784, %v784
    %v787 = vmul.f32 %v785, %v785
    %v788 = vsel %vm53, %v786, 0.0
    %789 = vadd.xlane.f32.xlu0 %v788
    %v790 = vpop.xlane.xlu0 %789
    %v791 = vsel %vm53, %v787, 0.0
    %792 = vadd.xlane.f32.xlu0 %v791
    %v793 = vpop.xlane.xlu0 %792
    %v794 = vmul.f32 %v790, %v60
    %v795 = vmul.f32 %v793, %v60
    %v796 = vadd.f32 %v794, 1e-05
    %v797 = vadd.f32 %v795, 1e-05
    %v798 = vrsqrt.pop %v796
    %v799 = vrsqrt.pop %v797
    %v800 = vmul.f32 %v784, %v798
    %v801 = vmul.f32 %v785, %v799
    %v803 = vlaneseq
    %v804 = vshrl.u32 %v803, 7
    %v805 = vsub.s32 0, %v804
    %v806 = vrot.slane %v774, %v805
    %v808 = vmul.f32 %v800, %v806
    %v809 = vmul.f32 %v801, %v806
    %v811 = vlaneseq
    %v812 = vshrl.u32 %v811, 7
    %v813 = vsub.s32 0, %v812
    %v814 = vrot.slane %v775, %v813
    %v816 = vadd.f32 %v808, %v814
    %v817 = vadd.f32 %v809, %v814
    %v818 = vpack.c.bf16 %v817, %v816
    %v819 = vld [vmem:[%s10] sm:$0xf]
    %v820 = vld [vmem:[%s10 + $0x4] sm:$0xf]
    %v821 = vld [vmem:[%s10 + $0x8] sm:$0xf]
    %v822 = vld [vmem:[%s10 + $0xc] sm:$0xf]
    %v823 = vld [vmem:[%s11] sm:$0x1]
    %v825 = vlaneseq
    %v826 = vshrl.u32 %v825, 7
    %v827 = vsub.s32 0, %v826
    %v828 = vrot.slane %v823, %v827
    %v834 = vunpack.c.l.b16 %v819
    %v835 = vunpack.c.l.b16 %v820
    %v836 = vunpack.c.l.b16 %v821
    %v837 = vunpack.c.l.b16 %v822
    %v838 = vpack.c.b16 %v835, %v834
    %v839 = vpack.c.b16 %v837, %v836
    %v843 = vsel %vm53, %v818, 0
    %845 = vmatprep.subr.bf16.mxu0 0
    %846 = vmatpush1.bf16.msra.mxu0 %v838
    %847 = vmatprep.subr.bf16.mxu0 0
    %848 = vmatpush1.bf16.msra.mxu0 %v839
    %849 = vmatprep.subr.bf16.mxu0 0
    %850 = vmatpush1.bf16.msra.mxu0 0
    %851 = vmatprep.subr.bf16.mxu0 0
    %852 = vmatpush1.bf16.msra.mxu0 0
    %853 = vmatprep.subr.bf16.mxu0 0
    %854 = vmatpush1.bf16.msra.mxu0 0
    %855 = vmatprep.subr.bf16.mxu0 0
    %856 = vmatpush1.bf16.msra.mxu0 0
    %857 = vmatprep.subr.bf16.mxu0 0
    %858 = vmatpush1.bf16.msra.mxu0 0
    %859 = vmatprep.subr.bf16.mxu0 0
    %860 = vmatpush1.bf16.msra.mxu0 0
    %861 = vmatprep.subr.bf16.mxu0 0
    %862 = vmatpush1.bf16.msra.mxu0 0
    %863 = vmatprep.subr.bf16.mxu0 0
    %864 = vmatpush1.bf16.msra.mxu0 0
    %865 = vmatprep.subr.bf16.mxu0 0
    %866 = vmatpush1.bf16.msra.mxu0 0
    %867 = vmatprep.subr.bf16.mxu0 0
    %868 = vmatpush1.bf16.msra.mxu0 0
    %869 = vmatprep.subr.bf16.mxu0 0
    %870 = vmatpush1.bf16.msra.mxu0 0
    %871 = vmatprep.subr.bf16.mxu0 0
    %872 = vmatpush1.bf16.msra.mxu0 0
    %873 = vmatprep.subr.bf16.mxu0 0
    %874 = vmatpush1.bf16.msra.mxu0 0
    %875 = vmatprep.subr.bf16.mxu0 0
    %876 = vmatpush1.bf16.msra.mxu0 0
    %877 = vmatprep.mubr.bf16.mxu0 0
    %878 = vmatmul.mubr.bf16.gmra.mrb[0].mxu0 %v843
    %v879 = vpop.f32.mrb[0].mxu0
    %v880 = vadd.f32 %v828, %v879
    %v881 = vpop.f32.mrb[0].mxu0
    %v882 = vpop.f32.mrb[0].mxu0
    %v883 = vadd.f32 %v828, %v882
    %v884 = vpop.f32.mrb[0].mxu0
    %885 = vdwg.mxu0
    %v886 = vmul.f32 %v880, 0.5
    %v887 = vmul.f32 %v883, 0.5
    %v888 = vmul.f32 %v880, 0.70710677
    %v889 = vmul.f32 %v883, 0.70710677
    %v890 = vand.u32 2147483647, %v888
    %v891 = vand.u32 2147483647, %v889
    %v892 = vmul.f32 %v890, 0.3275911
    %v893 = vmul.f32 %v891, 0.3275911
    %v894 = vadd.f32 %v892, 1.0
    %v895 = vadd.f32 %v893, 1.0
    %v896 = vrcp.pop %v894
    %v897 = vmul.f32 1.0, %v896
    %v898 = vrcp.pop %v895
    %v899 = vmul.f32 1.0, %v898
    %v900 = vmul.f32 %v897, 1.0614054
    %v901 = vmul.f32 %v899, 1.0614054
    %v902 = vadd.f32 %v900, -1.4531521
    %v903 = vadd.f32 %v901, -1.4531521
    %v904 = vmul.f32 %v902, %v897
    %v905 = vmul.f32 %v903, %v899
    %v906 = vadd.f32 %v904, 1.4214138
    %v907 = vadd.f32 %v905, 1.4214138
    %v908 = vmul.f32 %v906, %v897
    %v909 = vmul.f32 %v907, %v899
    %v910 = vadd.f32 %v908, -0.28449672
    %v911 = vadd.f32 %v909, -0.28449672
    %v912 = vmul.f32 %v910, %v897
    %v913 = vmul.f32 %v911, %v899
    %v914 = vadd.f32 %v912, 0.2548296
    %v915 = vadd.f32 %v913, 0.2548296
    %v916 = vmul.f32 %v914, %v897
    %v917 = vmul.f32 %v915, %v899
    %v918 = vsub.f32 0.0, %v890
    %v919 = vsub.f32 0.0, %v891
    %v920 = vmul.f32 %v918, %v890
    %v921 = vmul.f32 %v919, %v891
    %v922 = vmul.f32 %v920, 1.442695
    %v923 = vpow.pop %v922
    %v924 = vmul.f32 %v921, 1.442695
    %v925 = vpow.pop %v924
    %v926 = vmul.f32 %v916, %v923
    %v927 = vmul.f32 %v917, %v925
    %v928 = vsub.f32 1.0, %v926
    %v929 = vsub.f32 1.0, %v927
    %vm930 = vcmp.lt.f32.partialorder %v888, 0.0
    %vm931 = vcmp.lt.f32.partialorder %v889, 0.0
    %v932 = vsub.f32 0.0, %v928
    %v933 = vsub.f32 0.0, %v929
    %v934 = vsel %vm930, %v932, %v928
    %v935 = vsel %vm931, %v933, %v929
    %v936 = vadd.f32 %v934, 1.0
    %v937 = vadd.f32 %v935, 1.0
    %v938 = vmul.f32 %v886, %v936
    %v939 = vmul.f32 %v887, %v937
    %v940 = vpack.c.bf16 %v939, %v938
    %v941 = vld [vmem:[%s12] sm:$0xf]
    %v942 = vld [vmem:[%s12 + $0x4] sm:$0xf]
    %v943 = vld [vmem:[%s12 + $0x8] sm:$0xf]
    %v944 = vld [vmem:[%s12 + $0xc] sm:$0xf]
    %v945 = vld [vmem:[%s12 + $0x10] sm:$0xf]
    %v946 = vld [vmem:[%s12 + $0x14] sm:$0xf]
    %v947 = vld [vmem:[%s12 + $0x18] sm:$0xf]
    %v948 = vld [vmem:[%s12 + $0x1c] sm:$0xf]
    %v949 = vld [vmem:[%s12 + $0x20] sm:$0xf]
    %v950 = vld [vmem:[%s12 + $0x24] sm:$0xf]
    %v951 = vld [vmem:[%s12 + $0x28] sm:$0xf]
    %v952 = vld [vmem:[%s12 + $0x2c] sm:$0xf]
    %v953 = vld [vmem:[%s12 + $0x30] sm:$0xf]
    %v954 = vld [vmem:[%s12 + $0x34] sm:$0xf]
    %v955 = vld [vmem:[%s12 + $0x38] sm:$0xf]
    %v956 = vld [vmem:[%s12 + $0x3c] sm:$0xf]
    %v957 = vld [vmem:[%s13] sm:$0x1]
    %v959 = vlaneseq
    %v960 = vshrl.u32 %v959, 7
    %v961 = vsub.s32 0, %v960
    %v962 = vrot.slane %v957, %v961
    %v980 = vunpack.c.l.b16 %v941
    %v981 = vunpack.c.l.b16 %v942
    %v982 = vunpack.c.l.b16 %v943
    %v983 = vunpack.c.l.b16 %v944
    %v984 = vunpack.c.l.b16 %v945
    %v985 = vunpack.c.l.b16 %v946
    %v986 = vunpack.c.l.b16 %v947
    %v987 = vunpack.c.l.b16 %v948
    %v988 = vunpack.c.l.b16 %v949
    %v989 = vunpack.c.l.b16 %v950
    %v990 = vunpack.c.l.b16 %v951
    %v991 = vunpack.c.l.b16 %v952
    %v992 = vunpack.c.l.b16 %v953
    %v993 = vunpack.c.l.b16 %v954
    %v994 = vunpack.c.l.b16 %v955
    %v995 = vunpack.c.l.b16 %v956
    %v996 = vpack.c.b16 %v981, %v980
    %v997 = vpack.c.b16 %v983, %v982
    %v998 = vpack.c.b16 %v985, %v984
    %v999 = vpack.c.b16 %v987, %v986
    %v1000 = vpack.c.b16 %v989, %v988
    %v1001 = vpack.c.b16 %v991, %v990
    %v1002 = vpack.c.b16 %v993, %v992
    %v1003 = vpack.c.b16 %v995, %v994
    %1012 = vmatprep.subr.bf16.mxu0 0
    %1013 = vmatpush1.bf16.msra.mxu0 %v996
    %1014 = vmatprep.subr.bf16.mxu0 0
    %1015 = vmatpush1.bf16.msra.mxu0 %v997
    %1016 = vmatprep.subr.bf16.mxu0 0
    %1017 = vmatpush1.bf16.msra.mxu0 %v998
    %1018 = vmatprep.subr.bf16.mxu0 0
    %1019 = vmatpush1.bf16.msra.mxu0 %v999
    %1020 = vmatprep.subr.bf16.mxu0 0
    %1021 = vmatpush1.bf16.msra.mxu0 %v1000
    %1022 = vmatprep.subr.bf16.mxu0 0
    %1023 = vmatpush1.bf16.msra.mxu0 %v1001
    %1024 = vmatprep.subr.bf16.mxu0 0
    %1025 = vmatpush1.bf16.msra.mxu0 %v1002
    %1026 = vmatprep.subr.bf16.mxu0 0
    %1027 = vmatpush1.bf16.msra.mxu0 %v1003
    %1028 = vmatprep.subr.bf16.mxu0 0
    %1029 = vmatpush1.bf16.msra.mxu0 0
    %1030 = vmatprep.subr.bf16.mxu0 0
    %1031 = vmatpush1.bf16.msra.mxu0 0
    %1032 = vmatprep.subr.bf16.mxu0 0
    %1033 = vmatpush1.bf16.msra.mxu0 0
    %1034 = vmatprep.subr.bf16.mxu0 0
    %1035 = vmatpush1.bf16.msra.mxu0 0
    %1036 = vmatprep.subr.bf16.mxu0 0
    %1037 = vmatpush1.bf16.msra.mxu0 0
    %1038 = vmatprep.subr.bf16.mxu0 0
    %1039 = vmatpush1.bf16.msra.mxu0 0
    %1040 = vmatprep.subr.bf16.mxu0 0
    %1041 = vmatpush1.bf16.msra.mxu0 0
    %1042 = vmatprep.subr.bf16.mxu0 0
    %1043 = vmatpush1.bf16.msra.mxu0 0
    %1044 = vmatprep.mubr.bf16.mxu0 0
    %1045 = vmatmul.mubr.bf16.gmra.mrb[0].mxu0 %v940
    %v1046 = vpop.f32.mrb[0].mxu0
    %v1047 = vadd.f32 %v962, %v1046
    %v1048 = vpop.f32.mrb[0].mxu0
    %v1049 = vpop.f32.mrb[0].mxu0
    %v1050 = vadd.f32 %v962, %v1049
    %v1051 = vpop.f32.mrb[0].mxu0
    %1052 = vdwg.mxu0
    %v1053 = vadd.f32 %v772, %v1047
    %v1054 = vadd.f32 %v773, %v1050
    %1055 = vst.msk [vmem:[#allocation2] sm:$0xff] %vm53, %v1053
    %1056 = vst.msk [vmem:[#allocation2 + $0x8] sm:$0xff] %vm53, %v1054
    // Predicated region
    $region58: #{tpu_custom_call.1} parent=1 // pred_check
      _
    $region59: #{tpu_custom_call.1} parent=1 // pred_check_branch
      %1058 = sbr.rel (0) target = $region61
    $region60: #{tpu_custom_call.1} parent=1 // pred_region
      %s1060 = ssub.s32 256, 256
      %1061 = vsyncadd [#allocation3], %s1060
      %s1062 = sshll.u32 [#allocation2], 4
      %s1063 = int_to_ptr.vmem [resolvable:$true] %s1062
      %1068 = dma.vmem_to_hbm [thread:$0]  %s1063, 256, %s14, [#allocation3], 128, 128, 8
    $region61: #{tpu_custom_call.1} parent=1 // pred_fallthru
      _
    // Predicated region
    $region62: #{tpu_custom_call.1} parent=1 // pred_check
      _
    $region63: #{tpu_custom_call.1} parent=1 // pred_check_branch
      %1070 = sbr.rel (0) target = $region65
    $region64: #{tpu_custom_call.1} parent=1 // pred_region
      %1071 = dma.done [#allocation3], 256
    $region65: #{tpu_custom_call.1} parent=1 // pred_fallthru
      _
    %1072 = vsyncpa [#allocation3], 1

</llo_original>
